<compile_context>
chip_gen: v6e
topology: v6e:2x2x1
jax: 0.10.0
libtpu: 0.0.40
codegen_flags: <defaults>
</compile_context>

<pallas_src>
import functools

import jax
import jax.numpy as jnp
from jax.experimental import pallas as pl
from jax.experimental.pallas import tpu as pltpu

f32 = jnp.float32
bf16 = jnp.bfloat16
NEG = 1e30  # additive-mask sentinel (finite in f32 and bf16)


def _round_up(a, b):
    return ((a + b - 1) // b) * b


def _has_bf16_eup():
    """bf16 exp only on chips with a bf16 EUP path (v6e / v7x)."""
    try:
        kind = jax.devices()[0].device_kind.lower()
    except Exception:
        return False
    return ("v6" in kind) or ("v7" in kind) or ("7x" in kind)


def gat_layer1_kernel(xs_ref, xd_ref, adj_ref, wsrc_ref, wdst_ref, wasrc_ref, vp_ref,
                      x1h0_ref, x1h1_ref, *, hc, use_bf16_exp):
    """GATConv(F_in, Hc, heads=2) + BN(eval) + skip + ReLU for one dst-row block."""
    xs = xs_ref[...]                                   # (Np, F1) bf16 — all source nodes (+ones col)
    xd = xd_ref[...]                                   # (TM, F1) bf16 — this block's dst nodes
    # additive mask (0 on edges / -1e30 elsewhere), built once, shared by both heads
    bias = (adj_ref[...].astype(f32) - 1.0) * NEG      # (TM, Np) f32

    # source-side projection: [hh_h0 (Hc) | 1 | hh_h1 (Hc) | 1]
    hsrc = jnp.dot(xs, wsrc_ref[...], preferred_element_type=f32)    # (Np, 2Hc+2)
    # dst-side projection: [skip (2Hc, bias folded) | a_dst_h0 | a_dst_h1]
    hdst = jnp.dot(xd, wdst_ref[...], preferred_element_type=f32)    # (TM, 2Hc+2)
    # folded a_src, one row per head
    asrc = jax.lax.dot_general(wasrc_ref[...], xs, (((1,), (1,)), ((), ())),
                               preferred_element_type=f32)           # (2, Np)
    vp = vp_ref[...]                                   # (4, Hc): [s_h0, t_h0, s_h1, t_h1]

    def head(h):
        hh_aug = hsrc[:, h * (hc + 1):(h + 1) * (hc + 1)].astype(bf16)   # (Np, Hc+1) = [hh | 1]
        a_dst = hdst[:, 2 * hc + h: 2 * hc + h + 1]                      # (TM, 1)
        a_src = asrc[h:h + 1, :]                                         # (1, Np)
        logits = a_dst + a_src
        logits = jnp.maximum(logits, 0.2 * logits)                       # LeakyReLU(0.2)
        masked = logits + bias
        z = masked - jnp.max(masked, axis=-1, keepdims=True)
        e = jnp.exp(z.astype(bf16)) if use_bf16_exp else jnp.exp(z).astype(bf16)
        res = jnp.dot(e, hh_aug, preferred_element_type=f32)             # (TM, Hc+1)
        o = res[:, :hc] * pl.reciprocal(res[:, hc:hc + 1], approx=True)  # denom via ones col
        skip = hdst[:, h * hc:(h + 1) * hc]
        s = vp[2 * h:2 * h + 1, :]
        t = vp[2 * h + 1:2 * h + 2, :]
        return jnp.maximum(o * s + t + skip, 0.0)

    x1h0_ref[...] = head(0).astype(bf16)
    x1h1_ref[...] = head(1).astype(bf16)


def gat_layer2_kernel(x1s_ref, x1d_ref, adj_ref, wsrc_ref, wdst_ref, wasrc_ref, vp_ref,
                      l1w_ref, l2w_ref, l2b_ref, out_ref, *, hc, use_bf16_exp):
    """GATConv(2Hc, Hc, heads=1) + BN + skip + ReLU + lin1/ReLU + lin2 for one block."""
    x1s = x1s_ref[...]                                 # (Np, 2Hc+1) bf16 — all sources (+ones col)
    x1d = x1d_ref[...]                                 # (TM, 2Hc+1) bf16 — dst block
    bias = (adj_ref[...].astype(f32) - 1.0) * NEG      # (TM, Np) f32

    hsrc = jnp.dot(x1s, wsrc_ref[...], preferred_element_type=f32)   # (Np, Hc+1) = [hh2 | 1]
    hdst = jnp.dot(x1d, wdst_ref[...], preferred_element_type=f32)   # (TM, Hc+1) = [skip2 | a_dst2]
    asrc = jax.lax.dot_general(wasrc_ref[...], x1s, (((1,), (1,)), ((), ())),
                               preferred_element_type=f32)           # (1, Np)
    vp = vp_ref[...]                                   # (3, Hc): [s2, t2, l1_b]

    hh_aug = hsrc.astype(bf16)
    a_dst = hdst[:, hc:hc + 1]
    logits = a_dst + asrc
    logits = jnp.maximum(logits, 0.2 * logits)
    masked = logits + bias
    z = masked - jnp.max(masked, axis=-1, keepdims=True)
    e = jnp.exp(z.astype(bf16)) if use_bf16_exp else jnp.exp(z).astype(bf16)
    res = jnp.dot(e, hh_aug, preferred_element_type=f32)             # (TM, Hc+1)
    o = res[:, :hc] * pl.reciprocal(res[:, hc:hc + 1], approx=True)
    skip2 = hdst[:, :hc]
    x2 = jnp.maximum(o * vp[0:1, :] + vp[1:2, :] + skip2, 0.0)

    # classifier head (dropout = identity in eval mode)
    y = jnp.maximum(
        jnp.dot(x2.astype(bf16), l1w_ref[...], preferred_element_type=f32) + vp[2:3, :],
        0.0)
    out_ref[...] = (jnp.dot(y.astype(bf16), l2w_ref[...], preferred_element_type=f32)
                    + l2b_ref[...])


def enhanced_temporal_gnn(x, edge_index, edge_attr, params):
    N, F_in = x.shape
    Hc = params["l1_w"].shape[0]
    C = params["l2_w"].shape[1]
    Cp = _round_up(max(C, 1), 128)
    F1 = F_in + 1          # +ones column
    F2 = 2 * Hc + 1        # concat heads +ones column

    # edge_weights = sigmoid(temporal_attn(edge_attr)).squeeze(-1) — plain JAX
    ew = jax.nn.sigmoid(
        edge_attr.astype(f32) @ params["tattn_w"].T + params["tattn_b"])[:, 0]

    # destination-row block size / padded node count
    if N <= 256:
        Np = _round_up(max(N, 8), 32)
        TM = Np
    else:
        TM = 256
        Np = _round_up(N, TM)
    nB = Np // TM

    # dense adjacency adj[dst, src] as int8 with self-loops (padded rows get a self-loop
    # too so every softmax row stays finite; padded sources are masked out for real rows)
    src = edge_index[0].astype(jnp.int32)
    dst = edge_index[1].astype(jnp.int32)
    diag = jnp.arange(Np)
    adj = (jnp.zeros((Np, Np), jnp.int8)
           .at[dst, src].set(1)
           .at[diag, diag].set(1))

    # node features: pad rows, append ones column, pre-cast bf16
    xp = jnp.zeros((Np, F_in), f32).at[:N, :].set(x.astype(f32))
    x_aug = jnp.concatenate([xp, jnp.ones((Np, 1), f32)], axis=1).astype(bf16)

    def pad_row(w):   # append a zero row for the ones-column slot
        return jnp.concatenate([w, jnp.zeros((1, w.shape[1]), f32)], axis=0)

    # ---- layer-1 weight prep (att vectors folded through W; skip bias via ones col)
    w1h0, w1h1 = params["w1"][:, :Hc], params["w1"][:, Hc:]
    as1, ad1 = params["att_src1"], params["att_dst1"]
    ones_sel1 = jnp.zeros((F1, 1), f32).at[F_in, 0].set(1.0)
    w1src = jnp.concatenate(
        [pad_row(w1h0), ones_sel1, pad_row(w1h1), ones_sel1], axis=1).astype(bf16)
    skipw = jnp.concatenate([params["skip_w"], params["skip_b"]], axis=0)
    w1dst = jnp.concatenate(
        [skipw, pad_row(w1h0 @ ad1[0:1].T), pad_row(w1h1 @ ad1[1:2].T)], axis=1).astype(bf16)
    wa1 = jnp.concatenate(
        [pad_row(w1h0 @ as1[0:1].T).T, pad_row(w1h1 @ as1[1:2].T).T], axis=0).astype(bf16)

    # BatchNorm (eval, running stats) folded into scale/shift; GAT bias folded into shift
    eps = 1e-5
    s1 = params["bn1_g"] * jax.lax.rsqrt(params["bn1_v"] + eps)
    t1 = (params["b1"] - params["bn1_m"]) * s1 + params["bn1_b"]
    vpA = jnp.concatenate([s1[:, :Hc], t1[:, :Hc], s1[:, Hc:], t1[:, Hc:]], axis=0).astype(f32)

    s2 = params["bn2_g"] * jax.lax.rsqrt(params["bn2_v"] + eps)
    t2 = (params["b2"] - params["bn2_m"]) * s2 + params["bn2_b"]
    vpB = jnp.concatenate([s2, t2, params["l1_b"]], axis=0).astype(f32)

    # ---- layer-2 weight prep
    w2 = params["w2"]
    as2, ad2 = params["att_src2"], params["att_dst2"]
    ones_sel2 = jnp.zeros((F2, 1), f32).at[2 * Hc, 0].set(1.0)
    w2src = jnp.concatenate([pad_row(w2), ones_sel2], axis=1).astype(bf16)
    skip2w = jnp.concatenate([params["skip2_w"], params["skip2_b"]], axis=0)
    w2dst = jnp.concatenate([skip2w, pad_row(w2 @ ad2.T)], axis=1).astype(bf16)
    wa2 = pad_row(w2 @ as2.T).T.astype(bf16)

    l1w = params["l1_w"].astype(bf16)
    l2w = jnp.zeros((Hc, Cp), f32).at[:, :C].set(params["l2_w"]).astype(bf16)
    l2b = jnp.zeros((1, Cp), f32).at[:, :C].set(params["l2_b"])

    use_bf16_exp = _has_bf16_eup()
    cparams = pltpu.CompilerParams(dimension_semantics=("parallel",),
                                   vmem_limit_bytes=48 * 1024 * 1024)

    # ---------------- layer 1 ----------------
    ce1 = pl.CostEstimate(
        flops=int(nB * 2 * Np * F1 * (2 * Hc + 6)
                  + 2 * (2 * Np * Np * (Hc + 1) + 8 * Np * Np)),
        transcendentals=int(2 * Np * Np),
        bytes_accessed=int(Np * Np + (nB + 1) * Np * F1 * 2 + 4 * Np * Hc))
    x1h0, x1h1 = pl.pallas_call(
        functools.partial(gat_layer1_kernel, hc=Hc, use_bf16_exp=use_bf16_exp),
        grid=(nB,),
        in_specs=[
            pl.BlockSpec((Np, F1), lambda i: (0, 0)),            # x_aug (sources, full)
            pl.BlockSpec((TM, F1), lambda i: (i, 0)),            # x_aug (dst block)
            pl.BlockSpec((TM, Np), lambda i: (i, 0)),            # adjacency block (int8)
            pl.BlockSpec((F1, 2 * Hc + 2), lambda i: (0, 0)),    # w1src
            pl.BlockSpec((F1, 2 * Hc + 2), lambda i: (0, 0)),    # w1dst
            pl.BlockSpec((2, F1), lambda i: (0, 0)),             # folded att_src
            pl.BlockSpec((4, Hc), lambda i: (0, 0)),             # BN scale/shift
        ],
        out_specs=(pl.BlockSpec((TM, Hc), lambda i: (i, 0)),
                   pl.BlockSpec((TM, Hc), lambda i: (i, 0))),
        out_shape=(jax.ShapeDtypeStruct((Np, Hc), bf16),
                   jax.ShapeDtypeStruct((Np, Hc), bf16)),
        compiler_params=cparams,
        cost_estimate=ce1,
    )(x_aug, x_aug, adj, w1src, w1dst, wa1, vpA)

    # layer-2 source features: [head0 | head1 | ones] — wrapper-side layout plumbing only
    x1_aug = jnp.concatenate([x1h0, x1h1, jnp.ones((Np, 1), bf16)], axis=1)

    # ---------------- layer 2 + classifier ----------------
    ce2 = pl.CostEstimate(
        flops=int(nB * 2 * Np * F2 * (Hc + 3)
                  + 2 * Np * Np * (Hc + 1) + 8 * Np * Np
                  + 2 * Np * Hc * Hc + 2 * Np * Hc * Cp),
        transcendentals=int(Np * Np),
        bytes_accessed=int(Np * Np + (nB + 1) * Np * F2 * 2 + Np * Cp * 4))
    out_full = pl.pallas_call(
        functools.partial(gat_layer2_kernel, hc=Hc, use_bf16_exp=use_bf16_exp),
        grid=(nB,),
        in_specs=[
            pl.BlockSpec((Np, F2), lambda i: (0, 0)),            # x1_aug (sources, full)
            pl.BlockSpec((TM, F2), lambda i: (i, 0)),            # x1_aug (dst block)
            pl.BlockSpec((TM, Np), lambda i: (i, 0)),            # adjacency block (int8)
            pl.BlockSpec((F2, Hc + 1), lambda i: (0, 0)),        # w2src
            pl.BlockSpec((F2, Hc + 1), lambda i: (0, 0)),        # w2dst
            pl.BlockSpec((1, F2), lambda i: (0, 0)),             # folded att_src2
            pl.BlockSpec((3, Hc), lambda i: (0, 0)),             # BN2 scale/shift + l1_b
            pl.BlockSpec((Hc, Hc), lambda i: (0, 0)),            # lin1 weight
            pl.BlockSpec((Hc, Cp), lambda i: (0, 0)),            # lin2 weight (lane-padded)
            pl.BlockSpec((1, Cp), lambda i: (0, 0)),             # lin2 bias (lane-padded)
        ],
        out_specs=pl.BlockSpec((TM, Cp), lambda i: (i, 0)),
        out_shape=jax.ShapeDtypeStruct((Np, Cp), f32),
        compiler_params=cparams,
        cost_estimate=ce2,
    )(x1_aug, x1_aug, adj, w2src, w2dst, wa2, vpB, l1w, l2w, l2b)

    return out_full[:N, :C], ew


def init_params(key, node_features, hidden_channels, num_classes):
    F_in, Hc, C = node_features, hidden_channels, num_classes
    keys = jax.random.split(key, 11)

    def glorot(k, shape):
        fan_in, fan_out = shape[0], shape[1]
        lim = (6.0 / (fan_in + fan_out)) ** 0.5
        return jax.random.uniform(k, shape, jnp.float32, -lim, lim)

    return dict(
        # temporal_attn: Linear(2, 1)
        tattn_w=glorot(keys[0], (1, 2)),
        tattn_b=jnp.zeros((1, 1), jnp.float32),
        # conv1: GATConv(F_in, Hc, heads=2)
        w1=glorot(keys[1], (F_in, 2 * Hc)),
        att_src1=glorot(keys[2], (2, Hc)),
        att_dst1=glorot(keys[3], (2, Hc)),
        b1=jnp.zeros((1, 2 * Hc), jnp.float32),
        # conv2: GATConv(2*Hc, Hc, heads=1)
        w2=glorot(keys[4], (2 * Hc, Hc)),
        att_src2=glorot(keys[5], (1, Hc)),
        att_dst2=glorot(keys[6], (1, Hc)),
        b2=jnp.zeros((1, Hc), jnp.float32),
        # skip_lin / skip_lin2
        skip_w=glorot(keys[7], (F_in, 2 * Hc)),
        skip_b=jnp.zeros((1, 2 * Hc), jnp.float32),
        skip2_w=glorot(keys[8], (2 * Hc, Hc)),
        skip2_b=jnp.zeros((1, Hc), jnp.float32),
        # temp_norm1 / temp_norm2 (BatchNorm1d defaults, eval mode)
        bn1_g=jnp.ones((1, 2 * Hc), jnp.float32),
        bn1_b=jnp.zeros((1, 2 * Hc), jnp.float32),
        bn1_m=jnp.zeros((1, 2 * Hc), jnp.float32),
        bn1_v=jnp.ones((1, 2 * Hc), jnp.float32),
        bn2_g=jnp.ones((1, Hc), jnp.float32),
        bn2_b=jnp.zeros((1, Hc), jnp.float32),
        bn2_m=jnp.zeros((1, Hc), jnp.float32),
        bn2_v=jnp.ones((1, Hc), jnp.float32),
        # lin1 / lin2
        l1_w=glorot(keys[9], (Hc, Hc)),
        l1_b=jnp.zeros((1, Hc), jnp.float32),
        l2_w=glorot(keys[10], (Hc, C)),
        l2_b=jnp.zeros((1, C), jnp.float32),
    )


if __name__ == "__main__":
    key = jax.random.PRNGKey(0)
    kx, ks, kd, ke, kp = jax.random.split(key, 5)
    N, F_in, Hc, C, E = 32, 16, 32, 2, 64

    x = jax.random.normal(kx, (N, F_in), jnp.float32)
    src = jax.random.randint(ks, (E,), 0, N)
    dst = jax.random.randint(kd, (E,), 0, N)
    edge_index = jnp.stack([src, dst]).astype(jnp.int32)     # [2, E]
    edge_attr = jax.random.normal(ke, (E, 2), jnp.float32)   # [E, 2]

    params = init_params(kp, F_in, Hc, C)
    out, ew = enhanced_temporal_gnn(x, edge_index, edge_attr, params)
    jax.block_until_ready(out)
    jax.block_until_ready(ew)
    assert out.shape == (N, C) and ew.shape == (E,)
    assert bool(jnp.all(jnp.isfinite(out)))
    print("KERNEL_OK")
</pallas_src>

<mosaic_0001>
module attributes {stable_mosaic.version = 11 : i64} {
  func.func @gat_layer1_kernel(%arg0: i32, %arg1: memref<32x17xbf16, #tpu.memory_space<vmem>>, %arg2: memref<32x17xbf16, #tpu.memory_space<vmem>>, %arg3: memref<32x32xi8, #tpu.memory_space<vmem>>, %arg4: memref<17x66xbf16, #tpu.memory_space<vmem>>, %arg5: memref<17x66xbf16, #tpu.memory_space<vmem>>, %arg6: memref<2x17xbf16, #tpu.memory_space<vmem>>, %arg7: memref<4x32xf32, #tpu.memory_space<vmem>>, %arg8: memref<32x32xbf16, #tpu.memory_space<vmem>>, %arg9: memref<32x32xbf16, #tpu.memory_space<vmem>>) attributes {dimension_semantics = [#tpu.dimension_semantics<parallel>], iteration_bounds = array<i64: 1>, scalar_prefetch = 0 : i64, scratch_operands = 0 : i64, tpu.core_type = #tpu.core_type<tc>, window_params = [{pipeline_mode = #tpu.pipeline_mode<synchronous>, transform_indices = @transform_0, window_bounds = array<i64: 32, 17>}, {transform_indices = @transform_1, window_bounds = array<i64: 32, 17>}, {transform_indices = @transform_2, window_bounds = array<i64: 32, 32>}, {pipeline_mode = #tpu.pipeline_mode<synchronous>, transform_indices = @transform_3, window_bounds = array<i64: 17, 66>}, {pipeline_mode = #tpu.pipeline_mode<synchronous>, transform_indices = @transform_4, window_bounds = array<i64: 17, 66>}, {pipeline_mode = #tpu.pipeline_mode<synchronous>, transform_indices = @transform_5, window_bounds = array<i64: 2, 17>}, {pipeline_mode = #tpu.pipeline_mode<synchronous>, transform_indices = @transform_6, window_bounds = array<i64: 4, 32>}, {transform_indices = @transform_7, window_bounds = array<i64: 32, 32>}, {transform_indices = @transform_8, window_bounds = array<i64: 32, 32>}]} {
    %c0 = arith.constant 0 : index
    %c0_0 = arith.constant 0 : index
    %0 = vector.load %arg1[%c0, %c0_0] : memref<32x17xbf16, #tpu.memory_space<vmem>>, vector<32x17xbf16>
    %c0_1 = arith.constant 0 : index
    %c0_2 = arith.constant 0 : index
    %1 = vector.load %arg2[%c0_1, %c0_2] : memref<32x17xbf16, #tpu.memory_space<vmem>>, vector<32x17xbf16>
    %c0_3 = arith.constant 0 : index
    %c0_4 = arith.constant 0 : index
    %2 = vector.load %arg3[%c0_3, %c0_4] : memref<32x32xi8, #tpu.memory_space<vmem>>, vector<32x32xi8>
    %3 = arith.sitofp %2 : vector<32x32xi8> to vector<32x32xf32>
    %cst = arith.constant 1.000000e+00 : f32
    %4 = vector.broadcast %cst : f32 to vector<32x32xf32>
    %5 = arith.subf %3, %4 : vector<32x32xf32>
    %cst_5 = arith.constant 1.000000e+30 : f32
    %6 = vector.broadcast %cst_5 : f32 to vector<32x32xf32>
    %7 = arith.mulf %5, %6 : vector<32x32xf32>
    %c0_6 = arith.constant 0 : index
    %c0_7 = arith.constant 0 : index
    %8 = vector.load %arg4[%c0_6, %c0_7] : memref<17x66xbf16, #tpu.memory_space<vmem>>, vector<17x66xbf16>
    %cst_8 = arith.constant dense<0.000000e+00> : vector<32x66xf32>
    %9 = tpu.matmul %0, %8, %cst_8 {dimension_numbers = #tpu.dot_dimension_numbers<[1], [0], [0], [1], [0, 0, 1, 1], [], []>} : vector<32x17xbf16>, vector<17x66xbf16>, vector<32x66xf32> -> vector<32x66xf32>
    %c0_9 = arith.constant 0 : index
    %c0_10 = arith.constant 0 : index
    %10 = vector.load %arg5[%c0_9, %c0_10] : memref<17x66xbf16, #tpu.memory_space<vmem>>, vector<17x66xbf16>
    %cst_11 = arith.constant dense<0.000000e+00> : vector<32x66xf32>
    %11 = tpu.matmul %1, %10, %cst_11 {dimension_numbers = #tpu.dot_dimension_numbers<[1], [0], [0], [1], [0, 0, 1, 1], [], []>} : vector<32x17xbf16>, vector<17x66xbf16>, vector<32x66xf32> -> vector<32x66xf32>
    %c0_12 = arith.constant 0 : index
    %c0_13 = arith.constant 0 : index
    %12 = vector.load %arg6[%c0_12, %c0_13] : memref<2x17xbf16, #tpu.memory_space<vmem>>, vector<2x17xbf16>
    %cst_14 = arith.constant dense<0.000000e+00> : vector<2x32xf32>
    %13 = tpu.matmul %12, %0, %cst_14 {dimension_numbers = #tpu.dot_dimension_numbers<[1], [1], [0], [0], [0, 0, 1, 0], [], []>} : vector<2x17xbf16>, vector<32x17xbf16>, vector<2x32xf32> -> vector<2x32xf32>
    %c0_15 = arith.constant 0 : index
    %c0_16 = arith.constant 0 : index
    %14 = vector.load %arg7[%c0_15, %c0_16] : memref<4x32xf32, #tpu.memory_space<vmem>>, vector<4x32xf32>
    %15 = vector.extract_strided_slice %9 {offsets = [0, 0], sizes = [32, 33], strides = [1, 1]} : vector<32x66xf32> to vector<32x33xf32>
    %16 = arith.truncf %15 : vector<32x33xf32> to vector<32x33xbf16>
    %17 = vector.extract_strided_slice %11 {offsets = [0, 64], sizes = [32, 1], strides = [1, 1]} : vector<32x66xf32> to vector<32x1xf32>
    %18 = vector.extract_strided_slice %13 {offsets = [0, 0], sizes = [1, 32], strides = [1, 1]} : vector<2x32xf32> to vector<1x32xf32>
    %19 = vector.broadcast %17 : vector<32x1xf32> to vector<32x32xf32>
    %20 = vector.broadcast %18 : vector<1x32xf32> to vector<32x32xf32>
    %21 = arith.addf %19, %20 : vector<32x32xf32>
    %cst_17 = arith.constant 2.000000e-01 : f32
    %22 = vector.broadcast %cst_17 : f32 to vector<32x32xf32>
    %23 = arith.mulf %22, %21 : vector<32x32xf32>
    %24 = arith.maximumf %21, %23 : vector<32x32xf32>
    %25 = arith.addf %24, %7 : vector<32x32xf32>
    %cst_18 = arith.constant dense<0xFF800000> : vector<32xf32>
    %26 = vector.multi_reduction <maximumf>, %25, %cst_18 [1] : vector<32x32xf32> to vector<32xf32>
    %27 = vector.shape_cast %26 : vector<32xf32> to vector<32x1xf32>
    %28 = vector.broadcast %27 : vector<32x1xf32> to vector<32x32xf32>
    %29 = arith.subf %25, %28 : vector<32x32xf32>
    %30 = math.exp %29 : vector<32x32xf32>
    %31 = arith.truncf %30 : vector<32x32xf32> to vector<32x32xbf16>
    %cst_19 = arith.constant dense<0.000000e+00> : vector<32x33xf32>
    %32 = tpu.matmul %31, %16, %cst_19 {dimension_numbers = #tpu.dot_dimension_numbers<[1], [0], [0], [1], [0, 0, 1, 1], [], []>} : vector<32x32xbf16>, vector<32x33xbf16>, vector<32x33xf32> -> vector<32x33xf32>
    %33 = vector.extract_strided_slice %32 {offsets = [0, 0], sizes = [32, 32], strides = [1, 1]} : vector<32x33xf32> to vector<32x32xf32>
    %34 = vector.extract_strided_slice %32 {offsets = [0, 32], sizes = [32, 1], strides = [1, 1]} : vector<32x33xf32> to vector<32x1xf32>
    %35 = tpu.reciprocal %34 {approx = true} : vector<32x1xf32> -> vector<32x1xf32>
    %36 = vector.broadcast %35 : vector<32x1xf32> to vector<32x32xf32>
    %37 = arith.mulf %33, %36 : vector<32x32xf32>
    %38 = vector.extract_strided_slice %11 {offsets = [0, 0], sizes = [32, 32], strides = [1, 1]} : vector<32x66xf32> to vector<32x32xf32>
    %39 = vector.extract_strided_slice %14 {offsets = [0, 0], sizes = [1, 32], strides = [1, 1]} : vector<4x32xf32> to vector<1x32xf32>
    %40 = vector.extract_strided_slice %14 {offsets = [1, 0], sizes = [1, 32], strides = [1, 1]} : vector<4x32xf32> to vector<1x32xf32>
    %41 = vector.broadcast %39 : vector<1x32xf32> to vector<32x32xf32>
    %42 = arith.mulf %37, %41 : vector<32x32xf32>
    %43 = vector.broadcast %40 : vector<1x32xf32> to vector<32x32xf32>
    %44 = arith.addf %42, %43 : vector<32x32xf32>
    %45 = arith.addf %44, %38 : vector<32x32xf32>
    %cst_20 = arith.constant 0.000000e+00 : f32
    %46 = vector.broadcast %cst_20 : f32 to vector<32x32xf32>
    %47 = arith.maximumf %45, %46 : vector<32x32xf32>
    %48 = arith.truncf %47 : vector<32x32xf32> to vector<32x32xbf16>
    %c0_21 = arith.constant 0 : index
    %c0_22 = arith.constant 0 : index
    %49 = vector.load %arg8[%c0_21, %c0_22] : memref<32x32xbf16, #tpu.memory_space<vmem>>, vector<32x32xbf16>
    tpu.vector_store %arg8[%c0_21, %c0_22], %48 {strides = array<i32>} : memref<32x32xbf16, #tpu.memory_space<vmem>>, vector<32x32xbf16>,
    %50 = vector.extract_strided_slice %9 {offsets = [0, 33], sizes = [32, 33], strides = [1, 1]} : vector<32x66xf32> to vector<32x33xf32>
    %51 = arith.truncf %50 : vector<32x33xf32> to vector<32x33xbf16>
    %52 = vector.extract_strided_slice %11 {offsets = [0, 65], sizes = [32, 1], strides = [1, 1]} : vector<32x66xf32> to vector<32x1xf32>
    %53 = vector.extract_strided_slice %13 {offsets = [1, 0], sizes = [1, 32], strides = [1, 1]} : vector<2x32xf32> to vector<1x32xf32>
    %54 = vector.broadcast %52 : vector<32x1xf32> to vector<32x32xf32>
    %55 = vector.broadcast %53 : vector<1x32xf32> to vector<32x32xf32>
    %56 = arith.addf %54, %55 : vector<32x32xf32>
    %cst_23 = arith.constant 2.000000e-01 : f32
    %57 = vector.broadcast %cst_23 : f32 to vector<32x32xf32>
    %58 = arith.mulf %57, %56 : vector<32x32xf32>
    %59 = arith.maximumf %56, %58 : vector<32x32xf32>
    %60 = arith.addf %59, %7 : vector<32x32xf32>
    %cst_24 = arith.constant dense<0xFF800000> : vector<32xf32>
    %61 = vector.multi_reduction <maximumf>, %60, %cst_24 [1] : vector<32x32xf32> to vector<32xf32>
    %62 = vector.shape_cast %61 : vector<32xf32> to vector<32x1xf32>
    %63 = vector.broadcast %62 : vector<32x1xf32> to vector<32x32xf32>
    %64 = arith.subf %60, %63 : vector<32x32xf32>
    %65 = math.exp %64 : vector<32x32xf32>
    %66 = arith.truncf %65 : vector<32x32xf32> to vector<32x32xbf16>
    %cst_25 = arith.constant dense<0.000000e+00> : vector<32x33xf32>
    %67 = tpu.matmul %66, %51, %cst_25 {dimension_numbers = #tpu.dot_dimension_numbers<[1], [0], [0], [1], [0, 0, 1, 1], [], []>} : vector<32x32xbf16>, vector<32x33xbf16>, vector<32x33xf32> -> vector<32x33xf32>
    %68 = vector.extract_strided_slice %67 {offsets = [0, 0], sizes = [32, 32], strides = [1, 1]} : vector<32x33xf32> to vector<32x32xf32>
    %69 = vector.extract_strided_slice %67 {offsets = [0, 32], sizes = [32, 1], strides = [1, 1]} : vector<32x33xf32> to vector<32x1xf32>
    %70 = tpu.reciprocal %69 {approx = true} : vector<32x1xf32> -> vector<32x1xf32>
    %71 = vector.broadcast %70 : vector<32x1xf32> to vector<32x32xf32>
    %72 = arith.mulf %68, %71 : vector<32x32xf32>
    %73 = vector.extract_strided_slice %11 {offsets = [0, 32], sizes = [32, 32], strides = [1, 1]} : vector<32x66xf32> to vector<32x32xf32>
    %74 = vector.extract_strided_slice %14 {offsets = [2, 0], sizes = [1, 32], strides = [1, 1]} : vector<4x32xf32> to vector<1x32xf32>
    %75 = vector.extract_strided_slice %14 {offsets = [3, 0], sizes = [1, 32], strides = [1, 1]} : vector<4x32xf32> to vector<1x32xf32>
    %76 = vector.broadcast %74 : vector<1x32xf32> to vector<32x32xf32>
    %77 = arith.mulf %72, %76 : vector<32x32xf32>
    %78 = vector.broadcast %75 : vector<1x32xf32> to vector<32x32xf32>
    %79 = arith.addf %77, %78 : vector<32x32xf32>
    %80 = arith.addf %79, %73 : vector<32x32xf32>
    %cst_26 = arith.constant 0.000000e+00 : f32
    %81 = vector.broadcast %cst_26 : f32 to vector<32x32xf32>
    %82 = arith.maximumf %80, %81 : vector<32x32xf32>
    %83 = arith.truncf %82 : vector<32x32xf32> to vector<32x32xbf16>
    %c0_27 = arith.constant 0 : index
    %c0_28 = arith.constant 0 : index
    %84 = vector.load %arg9[%c0_27, %c0_28] : memref<32x32xbf16, #tpu.memory_space<vmem>>, vector<32x32xbf16>
    tpu.vector_store %arg9[%c0_27, %c0_28], %83 {strides = array<i32>} : memref<32x32xbf16, #tpu.memory_space<vmem>>, vector<32x32xbf16>,
    return
  }
  func.func @transform_0(%arg0: i32) -> (i32, i32) {
    %c0_i32 = arith.constant 0 : i32
    %c0_i32_0 = arith.constant 0 : i32
    %c0_i32_1 = arith.constant 0 : i32
    return %c0_i32, %c0_i32_0 : i32, i32
  }
  func.func @transform_1(%arg0: i32) -> (i32, i32) {
    %c0_i32 = arith.constant 0 : i32
    %c0_i32_0 = arith.constant 0 : i32
    return %arg0, %c0_i32 : i32, i32
  }
  func.func @transform_2(%arg0: i32) -> (i32, i32) {
    %c0_i32 = arith.constant 0 : i32
    %c0_i32_0 = arith.constant 0 : i32
    return %arg0, %c0_i32 : i32, i32
  }
  func.func @transform_3(%arg0: i32) -> (i32, i32) {
    %c0_i32 = arith.constant 0 : i32
    %c0_i32_0 = arith.constant 0 : i32
    %c0_i32_1 = arith.constant 0 : i32
    return %c0_i32, %c0_i32_0 : i32, i32
  }
  func.func @transform_4(%arg0: i32) -> (i32, i32) {
    %c0_i32 = arith.constant 0 : i32
    %c0_i32_0 = arith.constant 0 : i32
    %c0_i32_1 = arith.constant 0 : i32
    return %c0_i32, %c0_i32_0 : i32, i32
  }
  func.func @transform_5(%arg0: i32) -> (i32, i32) {
    %c0_i32 = arith.constant 0 : i32
    %c0_i32_0 = arith.constant 0 : i32
    %c0_i32_1 = arith.constant 0 : i32
    return %c0_i32, %c0_i32_0 : i32, i32
  }
  func.func @transform_6(%arg0: i32) -> (i32, i32) {
    %c0_i32 = arith.constant 0 : i32
    %c0_i32_0 = arith.constant 0 : i32
    %c0_i32_1 = arith.constant 0 : i32
    return %c0_i32, %c0_i32_0 : i32, i32
  }
  func.func @transform_7(%arg0: i32) -> (i32, i32) {
    %c0_i32 = arith.constant 0 : i32
    %c0_i32_0 = arith.constant 0 : i32
    return %arg0, %c0_i32 : i32, i32
  }
  func.func @transform_8(%arg0: i32) -> (i32, i32) {
    %c0_i32 = arith.constant 0 : i32
    %c0_i32_0 = arith.constant 0 : i32
    return %arg0, %c0_i32 : i32, i32
  }
}

</mosaic_0001>

<llo_original>
// kernel: tpu_custom_call.1
$region0: #{tpu_custom_call.1}
  #allocation0 [shape = 'u32[]', space=smem, size = 0x4, offset = 0x4, fixed_abs, tag = 'smem constant byte address 0x4 - core index']
  #allocation1 [shape = 'u32[144,128]{1,0:T(1,128)}', space=vmem, size = 0x12000, scoped, tag = 'internal scratch']
  %s0 = inlined_call_operand.vmem [shape: bf16[32,17], index: 0, kind: input, shape index: {}]
  %s1 = inlined_call_operand.vmem [shape: bf16[32,17], index: 1, kind: input, shape index: {}]
  %s2 = inlined_call_operand.vmem [shape: s8[32,32], index: 2, kind: input, shape index: {}]
  %s3 = inlined_call_operand.vmem [shape: bf16[17,66], index: 3, kind: input, shape index: {}]
  %s4 = inlined_call_operand.vmem [shape: bf16[17,66], index: 4, kind: input, shape index: {}]
  %s5 = inlined_call_operand.vmem [shape: bf16[2,17], index: 5, kind: input, shape index: {}]
  %s6 = inlined_call_operand.vmem [shape: f32[4,32], index: 6, kind: input, shape index: {}]
  %s7 = inlined_call_operand.hbm [shape: bf16[32,32], index: 7, kind: output, shape index: {0}]
  %s8 = inlined_call_operand.hbm [shape: bf16[32,32], index: 8, kind: output, shape index: {1}]
  %9 = xla_tuple %s7, %s8
  %s10 = sld [smem:[#allocation0]]
  $region46: #{tpu_custom_call.1} parent=0
    _
  %s12 = ssub.s32 1, %s10
  %s13 = scalar_select 0, %s12, %s10
  $region1: #{tpu_custom_call.1} parent=0
    #allocation2 [shape = 'u8[8192]{0}', space=vmem, size = 0x2000, scoped, tag = 'output window, operand 0, single buffered']
    #allocation3 [shape = 's32[1]{0}', space=sflag, size = 0x4, scoped, tag = 'scoped memory for tpu_custom_call.1']
    #allocation4 [shape = 'u8[8192]{0}', space=vmem, size = 0x2000, scoped, tag = 'output window, operand 1, single buffered']
    #allocation5 [shape = 's32[1]{0}', space=sflag, size = 0x4, scoped, tag = 'scoped memory for tpu_custom_call.1']
    %14 = vsyncpa [#allocation3], 0
    %15 = vsyncpa [#allocation5], 0
    // Predicated region
    $region2: #{tpu_custom_call.1} parent=1 // pred_check
      _
    $region3: #{tpu_custom_call.1} parent=1 // pred_check_branch
      %17 = sbr.rel (0) target = $region5
    $region4: #{tpu_custom_call.1} parent=1 // pred_region
      _
    $region5: #{tpu_custom_call.1} parent=1 // pred_fallthru
      _
    // Predicated region
    $region6: #{tpu_custom_call.1} parent=1 // pred_check
      _
    $region7: #{tpu_custom_call.1} parent=1 // pred_check_branch
      %19 = sbr.rel (0) target = $region9
    $region8: #{tpu_custom_call.1} parent=1 // pred_region
      _
    $region9: #{tpu_custom_call.1} parent=1 // pred_fallthru
      _
    // Predicated region
    $region10: #{tpu_custom_call.1} parent=1 // pred_check
      _
    $region11: #{tpu_custom_call.1} parent=1 // pred_check_branch
      %21 = sbr.rel (0) target = $region13
    $region12: #{tpu_custom_call.1} parent=1 // pred_region
      _
    $region13: #{tpu_custom_call.1} parent=1 // pred_fallthru
      _
    // Predicated region
    $region14: #{tpu_custom_call.1} parent=1 // pred_check
      _
    $region15: #{tpu_custom_call.1} parent=1 // pred_check_branch
      %23 = sbr.rel (0) target = $region17
    $region16: #{tpu_custom_call.1} parent=1 // pred_region
      _
    $region17: #{tpu_custom_call.1} parent=1 // pred_fallthru
      _
    // Predicated region
    $region18: #{tpu_custom_call.1} parent=1 // pred_check
      _
    $region19: #{tpu_custom_call.1} parent=1 // pred_check_branch
      %25 = sbr.rel (0) target = $region21
    $region20: #{tpu_custom_call.1} parent=1 // pred_region
      _
    $region21: #{tpu_custom_call.1} parent=1 // pred_fallthru
      _
    // Predicated region
    $region22: #{tpu_custom_call.1} parent=1 // pred_check
      _
    $region23: #{tpu_custom_call.1} parent=1 // pred_check_branch
      %27 = sbr.rel (0) target = $region25
    $region24: #{tpu_custom_call.1} parent=1 // pred_region
      _
    $region25: #{tpu_custom_call.1} parent=1 // pred_fallthru
      _
    // Predicated region
    $region26: #{tpu_custom_call.1} parent=1 // pred_check
      _
    $region27: #{tpu_custom_call.1} parent=1 // pred_check_branch
      %29 = sbr.rel (0) target = $region29
    $region28: #{tpu_custom_call.1} parent=1 // pred_region
      _
    $region29: #{tpu_custom_call.1} parent=1 // pred_fallthru
      _
    %v31 = vld [vmem:[%s0] sm:$0xf]
    %v32 = vld [vmem:[%s0 + $0x4] sm:$0xf]
    %v33 = vld [vmem:[%s0 + $0x8] sm:$0xf]
    %v34 = vld [vmem:[%s0 + $0xc] sm:$0xf]
    %v35 = vld [vmem:[%s1] sm:$0xf]
    %v36 = vld [vmem:[%s1 + $0x4] sm:$0xf]
    %v37 = vld [vmem:[%s1 + $0x8] sm:$0xf]
    %v38 = vld [vmem:[%s1 + $0xc] sm:$0xf]
    %v39 = vld [vmem:[%s2] sm:$0xff]
    %v40 = vunpack.c.0.s8 %v39
    %v41 = vunpack.c.1.s8 %v39
    %v42 = vunpack.c.2.s8 %v39
    %v43 = vunpack.c.3.s8 %v39
    %v44 = vcvt.s32.f32 %v40
    %v45 = vcvt.s32.f32 %v41
    %v46 = vcvt.s32.f32 %v42
    %v47 = vcvt.s32.f32 %v43
    %v48 = vsub.f32 %v44, 1.0
    %v49 = vsub.f32 %v45, 1.0
    %v50 = vsub.f32 %v46, 1.0
    %v51 = vsub.f32 %v47, 1.0
    %v52 = vmul.f32 %v48, 1e+30
    %v53 = vmul.f32 %v49, 1e+30
    %v54 = vmul.f32 %v50, 1e+30
    %v55 = vmul.f32 %v51, 1e+30
    %v56 = vld [vmem:[%s3] sm:$0xf]
    %v57 = vld [vmem:[%s3 + $0x4] sm:$0xf]
    %v58 = vld [vmem:[%s3 + $0x8] sm:$0x1]
    %v63 = vunpack.c.l.b16 %v31
    %v64 = vunpack.c.l.b16 %v32
    %v65 = vunpack.c.l.b16 %v33
    %v66 = vunpack.c.l.b16 %v34
    %v67 = vpack.c.b16 %v64, %v63
    %v68 = vpack.c.b16 %v66, %v65
    %v72 = vunpack.c.l.b16 %v56
    %v73 = vunpack.c.l.b16 %v57
    %v74 = vunpack.c.l.b16 %v58
    %v75 = vpack.c.b16 %v73, %v72
    %v76 = vpack.c.b16 %v74, %v74
    %vm78 = vcmask 138240
    %v80 = vsel %vm78, %v67, 0
    %v83 = vsel %vm78, %v68, 0
    %vm85 = vcmask 1040384
    %v86 = vsel 0, 4294967295, 65535
    %v87 = vsel %vm85, %v86, 0
    %v89 = vand.u32 %v76, %v87
    %91 = vmatprep.subr.bf16.mxu0 0
    %92 = vmatpush1.bf16.msra.mxu0 0
    %93 = vmatprep.subr.bf16.mxu0 0
    %94 = vmatpush1.bf16.msra.mxu0 0
    %95 = vmatprep.subr.bf16.mxu0 0
    %96 = vmatpush1.bf16.msra.mxu0 0
    %97 = vmatprep.subr.bf16.mxu0 0
    %98 = vmatpush1.bf16.msra.mxu0 0
    %99 = vmatprep.subr.bf16.mxu0 0
    %100 = vmatpush1.bf16.msra.mxu0 0
    %101 = vmatprep.subr.bf16.mxu0 0
    %102 = vmatpush1.bf16.msra.mxu0 0
    %103 = vmatprep.subr.bf16.mxu0 0
    %104 = vmatpush1.bf16.msra.mxu0 %v89
    %105 = vmatprep.subr.bf16.mxu0 0
    %106 = vmatpush1.bf16.msra.mxu0 %v75
    %107 = vmatprep.subr.bf16.mxu0 0
    %108 = vmatpush2.bf16.msra.mxu0 0
    %109 = vmatprep.subr.bf16.mxu0 0
    %110 = vmatpush2.bf16.msra.mxu0 0
    %111 = vmatprep.subr.bf16.mxu0 0
    %112 = vmatpush2.bf16.msra.mxu0 0
    %113 = vmatprep.subr.bf16.mxu0 0
    %114 = vmatpush2.bf16.msra.mxu0 0
    %115 = vmatprep.subr.bf16.mxu0 0
    %116 = vmatpush2.bf16.msra.mxu0 0
    %117 = vmatprep.subr.bf16.mxu0 0
    %118 = vmatpush2.bf16.msra.mxu0 0
    %119 = vmatprep.subr.bf16.mxu0 0
    %120 = vmatpush2.bf16.msra.mxu0 0
    %121 = vmatprep.subr.bf16.mxu0 0
    %122 = vmatpush2.bf16.msra.mxu0 0
    %123 = vmatprep.mubr.bf16.mxu0 0
    %124 = vmatmul.mubr.bf16.gmra.mxu0 %v80
    %v125 = vpop.f32.mrf.mxu0
    %v126 = vadd.f32 0.0, %v125
    %v127 = vpop.f32.mrf.mxu0
    %v128 = vpop.f32.mrf.mxu0
    %v129 = vadd.f32 0.0, %v128
    %v130 = vpop.f32.mrf.mxu0
    %131 = vmatprep.mubr.bf16.mxu0 0
    %132 = vmatmul.mubr.bf16.gmra.mxu0 %v83
    %v133 = vpop.f32.mrf.mxu0
    %v134 = vadd.f32 0.0, %v133
    %v135 = vpop.f32.mrf.mxu0
    %v136 = vpop.f32.mrf.mxu0
    %v137 = vadd.f32 0.0, %v136
    %v138 = vpop.f32.mrf.mxu0
    %139 = vdwg.mxu0
    %v140 = vld [vmem:[%s4] sm:$0xf]
    %v141 = vld [vmem:[%s4 + $0x4] sm:$0xf]
    %v142 = vld [vmem:[%s4 + $0x8] sm:$0x1]
    %v147 = vunpack.c.l.b16 %v35
    %v148 = vunpack.c.l.b16 %v36
    %v149 = vunpack.c.l.b16 %v37
    %v150 = vunpack.c.l.b16 %v38
    %v151 = vpack.c.b16 %v148, %v147
    %v152 = vpack.c.b16 %v150, %v149
    %v156 = vunpack.c.l.b16 %v140
    %v157 = vunpack.c.l.b16 %v141
    %v158 = vunpack.c.l.b16 %v142
    %v159 = vpack.c.b16 %v157, %v156
    %v160 = vpack.c.b16 %v158, %v158
    %v163 = vsel %vm78, %v151, 0
    %v166 = vsel %vm78, %v152, 0
    %v169 = vand.u32 %v160, %v87
    %171 = vmatprep.subr.bf16.mxu0 0
    %172 = vmatpush1.bf16.msra.mxu0 0
    %173 = vmatprep.subr.bf16.mxu0 0
    %174 = vmatpush1.bf16.msra.mxu0 0
    %175 = vmatprep.subr.bf16.mxu0 0
    %176 = vmatpush1.bf16.msra.mxu0 0
    %177 = vmatprep.subr.bf16.mxu0 0
    %178 = vmatpush1.bf16.msra.mxu0 0
    %179 = vmatprep.subr.bf16.mxu0 0
    %180 = vmatpush1.bf16.msra.mxu0 0
    %181 = vmatprep.subr.bf16.mxu0 0
    %182 = vmatpush1.bf16.msra.mxu0 0
    %183 = vmatprep.subr.bf16.mxu0 0
    %184 = vmatpush1.bf16.msra.mxu0 %v169
    %185 = vmatprep.subr.bf16.mxu0 0
    %186 = vmatpush1.bf16.msra.mxu0 %v159
    %187 = vmatprep.subr.bf16.mxu0 0
    %188 = vmatpush2.bf16.msra.mxu0 0
    %189 = vmatprep.subr.bf16.mxu0 0
    %190 = vmatpush2.bf16.msra.mxu0 0
    %191 = vmatprep.subr.bf16.mxu0 0
    %192 = vmatpush2.bf16.msra.mxu0 0
    %193 = vmatprep.subr.bf16.mxu0 0
    %194 = vmatpush2.bf16.msra.mxu0 0
    %195 = vmatprep.subr.bf16.mxu0 0
    %196 = vmatpush2.bf16.msra.mxu0 0
    %197 = vmatprep.subr.bf16.mxu0 0
    %198 = vmatpush2.bf16.msra.mxu0 0
    %199 = vmatprep.subr.bf16.mxu0 0
    %200 = vmatpush2.bf16.msra.mxu0 0
    %201 = vmatprep.subr.bf16.mxu0 0
    %202 = vmatpush2.bf16.msra.mxu0 0
    %203 = vmatprep.mubr.bf16.mxu0 0
    %204 = vmatmul.mubr.bf16.gmra.mxu0 %v163
    %v205 = vpop.f32.mrf.mxu0
    %v206 = vadd.f32 0.0, %v205
    %v207 = vpop.f32.mrf.mxu0
    %v208 = vpop.f32.mrf.mxu0
    %v209 = vadd.f32 0.0, %v208
    %v210 = vpop.f32.mrf.mxu0
    %211 = vmatprep.mubr.bf16.mxu0 0
    %212 = vmatmul.mubr.bf16.gmra.mxu0 %v166
    %v213 = vpop.f32.mrf.mxu0
    %v214 = vadd.f32 0.0, %v213
    %v215 = vpop.f32.mrf.mxu0
    %v216 = vpop.f32.mrf.mxu0
    %v217 = vadd.f32 0.0, %v216
    %v218 = vpop.f32.mrf.mxu0
    %219 = vdwg.mxu0
    %v220 = vld [vmem:[%s5] sm:$0x1]
    %v222 = vsel %vm78, %v220, 0
    %224 = vmatprep.subr.bf16.mxu0 0
    %225 = vmatpush1.bf16.xpose.msra.mxu0 0
    %226 = vmatprep.subr.bf16.mxu0 0
    %227 = vmatpush1.bf16.xpose.msra.mxu0 0
    %228 = vmatprep.subr.bf16.mxu0 0
    %229 = vmatpush1.bf16.xpose.msra.mxu0 0
    %230 = vmatprep.subr.bf16.mxu0 0
    %231 = vmatpush1.bf16.xpose.msra.mxu0 0
    %232 = vmatprep.subr.bf16.mxu0 0
    %233 = vmatpush1.bf16.xpose.msra.mxu0 0
    %234 = vmatprep.subr.bf16.mxu0 0
    %235 = vmatpush1.bf16.xpose.msra.mxu0 0
    %236 = vmatprep.subr.bf16.mxu0 0
    %237 = vmatpush1.bf16.xpose.msra.mxu0 %v83
    %238 = vmatprep.subr.bf16.mxu0 0
    %239 = vmatpush1.bf16.xpose.msra.mxu0 %v80
    %240 = vmatprep.subr.bf16.mxu0 0
    %241 = vmatpush2.bf16.xpose.msra.mxu0 0
    %242 = vmatprep.subr.bf16.mxu0 0
    %243 = vmatpush2.bf16.xpose.msra.mxu0 0
    %244 = vmatprep.subr.bf16.mxu0 0
    %245 = vmatpush2.bf16.xpose.msra.mxu0 0
    %246 = vmatprep.subr.bf16.mxu0 0
    %247 = vmatpush2.bf16.xpose.msra.mxu0 0
    %248 = vmatprep.subr.bf16.mxu0 0
    %249 = vmatpush2.bf16.xpose.msra.mxu0 0
    %250 = vmatprep.subr.bf16.mxu0 0
    %251 = vmatpush2.bf16.xpose.msra.mxu0 0
    %252 = vmatprep.subr.bf16.mxu0 0
    %253 = vmatpush2.bf16.xpose.msra.mxu0 0
    %254 = vmatprep.subr.bf16.mxu0 0
    %255 = vmatpush2.bf16.xpose.msra.mxu0 0
    %256 = vmatprep.mubr.bf16.mxu0 0
    %257 = vmatmul.mubr.bf16.gmra.mxu0 %v222
    %v258 = vpop.f32.mrf.mxu0
    %v259 = vadd.f32 0.0, %v258
    %v260 = vpop.f32.mrf.mxu0
    %v261 = vpop.f32.mrf.mxu0
    %v262 = vpop.f32.mrf.mxu0
    %263 = vdwg.mxu0
    %v264 = vld [vmem:[%s6] sm:$0xf]
    %v265 = vpack.c.bf16 %v129, %v126
    %v266 = vpack.c.bf16 %v137, %v134
    %268 = vset.pattern.permute.xlu0 64
    %269 = vperm.xlu0 %268, %v206
    %v270 = vpop.permute.xlu0 %269
    %273 = vset.pattern.permute.xlu0 64
    %274 = vperm.xlu0 %273, %v209
    %v275 = vpop.permute.xlu0 %274
    %278 = vset.pattern.permute.xlu0 64
    %279 = vperm.xlu0 %278, %v214
    %v280 = vpop.permute.xlu0 %279
    %283 = vset.pattern.permute.xlu0 64
    %284 = vperm.xlu0 %283, %v217
    %v285 = vpop.permute.xlu0 %284
    %v287 = vlaneseq
    %v288 = vshrl.u32 %v287, 7
    %v289 = vsub.s32 0, %v288
    %v290 = vrot.slane %v259, %v289
    %v291 = vadd.f32 %v270, %v290
    %v292 = vadd.f32 %v275, %v290
    %v293 = vadd.f32 %v280, %v290
    %v294 = vadd.f32 %v285, %v290
    %v295 = vmul.f32 %v291, 0.2
    %v296 = vmul.f32 %v292, 0.2
    %v297 = vmul.f32 %v293, 0.2
    %v298 = vmul.f32 %v294, 0.2
    %v299 = vmax.f32 %v291, %v295
    %v300 = vmax.f32 %v292, %v296
    %v301 = vmax.f32 %v293, %v297
    %v302 = vmax.f32 %v294, %v298
    %v303 = vadd.f32 %v299, %v52
    %v304 = vadd.f32 %v300, %v53
    %v305 = vadd.f32 %v301, %v54
    %v306 = vadd.f32 %v302, %v55
    %vm307 = vcmask 261120
    %v308 = vsel %vm307, %v303, -inf
    %309 = vmax.xlane.f32.xlu0 %v308
    %v310 = vpop.xlane.xlu0 %309
    %v311 = vsel %vm307, %v304, -inf
    %312 = vmax.xlane.f32.xlu0 %v311
    %v313 = vpop.xlane.xlu0 %312
    %v314 = vsel %vm307, %v305, -inf
    %315 = vmax.xlane.f32.xlu0 %v314
    %v316 = vpop.xlane.xlu0 %315
    %v317 = vsel %vm307, %v306, -inf
    %318 = vmax.xlane.f32.xlu0 %v317
    %v319 = vpop.xlane.xlu0 %318
    %v320 = vsub.f32 %v303, %v310
    %v321 = vsub.f32 %v304, %v313
    %v322 = vsub.f32 %v305, %v316
    %v323 = vsub.f32 %v306, %v319
    %v324 = vmul.f32 %v320, 1.442695
    %v325 = vpow.pop %v324
    %v326 = vmul.f32 %v321, 1.442695
    %v327 = vpow.pop %v326
    %v328 = vmul.f32 %v322, 1.442695
    %v329 = vpow.pop %v328
    %v330 = vmul.f32 %v323, 1.442695
    %v331 = vpow.pop %v330
    %v332 = vpack.c.bf16 %v327, %v325
    %v333 = vpack.c.bf16 %v331, %v329
    %v335 = vsel %vm307, %v332, 0
    %v338 = vsel %vm307, %v333, 0
    %340 = vmatprep.subr.bf16.mxu0 0
    %341 = vmatpush1.bf16.msra.mxu0 0
    %342 = vmatprep.subr.bf16.mxu0 0
    %343 = vmatpush1.bf16.msra.mxu0 0
    %344 = vmatprep.subr.bf16.mxu0 0
    %345 = vmatpush1.bf16.msra.mxu0 0
    %346 = vmatprep.subr.bf16.mxu0 0
    %347 = vmatpush1.bf16.msra.mxu0 0
    %348 = vmatprep.subr.bf16.mxu0 0
    %349 = vmatpush1.bf16.msra.mxu0 0
    %350 = vmatprep.subr.bf16.mxu0 0
    %351 = vmatpush1.bf16.msra.mxu0 0
    %352 = vmatprep.subr.bf16.mxu0 0
    %353 = vmatpush1.bf16.msra.mxu0 %v266
    %354 = vmatprep.subr.bf16.mxu0 0
    %355 = vmatpush1.bf16.msra.mxu0 %v265
    %356 = vmatprep.subr.bf16.mxu0 0
    %357 = vmatpush2.bf16.msra.mxu0 0
    %358 = vmatprep.subr.bf16.mxu0 0
    %359 = vmatpush2.bf16.msra.mxu0 0
    %360 = vmatprep.subr.bf16.mxu0 0
    %361 = vmatpush2.bf16.msra.mxu0 0
    %362 = vmatprep.subr.bf16.mxu0 0
    %363 = vmatpush2.bf16.msra.mxu0 0
    %364 = vmatprep.subr.bf16.mxu0 0
    %365 = vmatpush2.bf16.msra.mxu0 0
    %366 = vmatprep.subr.bf16.mxu0 0
    %367 = vmatpush2.bf16.msra.mxu0 0
    %368 = vmatprep.subr.bf16.mxu0 0
    %369 = vmatpush2.bf16.msra.mxu0 0
    %370 = vmatprep.subr.bf16.mxu0 0
    %371 = vmatpush2.bf16.msra.mxu0 0
    %372 = vmatprep.mubr.bf16.mxu0 0
    %373 = vmatmul.mubr.bf16.gmra.mxu0 %v335
    %v374 = vpop.f32.mrf.mxu0
    %v375 = vadd.f32 0.0, %v374
    %v376 = vpop.f32.mrf.mxu0
    %v377 = vpop.f32.mrf.mxu0
    %v378 = vadd.f32 0.0, %v377
    %v379 = vpop.f32.mrf.mxu0
    %380 = vmatprep.mubr.bf16.mxu0 0
    %381 = vmatmul.mubr.bf16.gmra.mxu0 %v338
    %v382 = vpop.f32.mrf.mxu0
    %v383 = vadd.f32 0.0, %v382
    %v384 = vpop.f32.mrf.mxu0
    %v385 = vpop.f32.mrf.mxu0
    %v386 = vadd.f32 0.0, %v385
    %v387 = vpop.f32.mrf.mxu0
    %388 = vdwg.mxu0
    %v389 = vrcp.pop %v375
    %v390 = vrcp.pop %v378
    %v391 = vrcp.pop %v383
    %v392 = vrcp.pop %v386
    %394 = vset.pattern.permute.xlu0 32
    %395 = vperm.xlu0 %394, %v389
    %v396 = vpop.permute.xlu0 %395
    %399 = vset.pattern.permute.xlu0 32
    %400 = vperm.xlu0 %399, %v390
    %v401 = vpop.permute.xlu0 %400
    %404 = vset.pattern.permute.xlu0 32
    %405 = vperm.xlu0 %404, %v391
    %v406 = vpop.permute.xlu0 %405
    %409 = vset.pattern.permute.xlu0 32
    %410 = vperm.xlu0 %409, %v392
    %v411 = vpop.permute.xlu0 %410
    %v413 = vmul.f32 %v375, %v396
    %v414 = vmul.f32 %v378, %v401
    %v415 = vmul.f32 %v383, %v406
    %v416 = vmul.f32 %v386, %v411
    %v417 = vlaneseq
    %v418 = vshrl.u32 %v417, 7
    %v419 = vsub.s32 0, %v418
    %v420 = vrot.slane %v264, %v419
    %v421 = vmul.f32 %v413, %v420
    %v422 = vmul.f32 %v414, %v420
    %v423 = vmul.f32 %v415, %v420
    %v424 = vmul.f32 %v416, %v420
    %v425 = vlaneseq
    %v426 = vshrl.u32 %v425, 7
    %v427 = vsub.s32 1, %v426
    %v428 = vrot.slane %v264, %v427
    %v429 = vadd.f32 %v421, %v428
    %v430 = vadd.f32 %v422, %v428
    %v431 = vadd.f32 %v423, %v428
    %v432 = vadd.f32 %v424, %v428
    %v433 = vadd.f32 %v429, %v206
    %v434 = vadd.f32 %v430, %v209
    %v435 = vadd.f32 %v431, %v214
    %v436 = vadd.f32 %v432, %v217
    %v437 = vmax.f32 %v433, 0.0
    %v438 = vmax.f32 %v434, 0.0
    %v439 = vmax.f32 %v435, 0.0
    %v440 = vmax.f32 %v436, 0.0
    %v441 = vpack.c.bf16 %v438, %v437
    %v442 = vpack.c.bf16 %v440, %v439
    %v445 = vunpack.c.l.b16 %v441
    %v446 = vunpack.c.h.b16 %v441
    %v447 = vunpack.c.l.b16 %v442
    %v448 = vunpack.c.h.b16 %v442
    %v449 = vpack.c.b16 %v445, %v445
    %v450 = vpack.c.b16 %v446, %v446
    %v451 = vpack.c.b16 %v447, %v447
    %v452 = vpack.c.b16 %v448, %v448
    %vm457 = vcmask 257024
    %458 = vst.msk [vmem:[#allocation2] sm:$0xf] %vm457, %v449
    %459 = vst.msk [vmem:[#allocation2 + $0x4] sm:$0xf] %vm457, %v450
    %460 = vst.msk [vmem:[#allocation2 + $0x8] sm:$0xf] %vm457, %v451
    %461 = vst.msk [vmem:[#allocation2 + $0xc] sm:$0xf] %vm457, %v452
    %462 = vset.pattern.permute.xlu0 65
    %463 = vperm.xlu0 %462, %v206
    %v464 = vpop.permute.xlu0 %463
    %466 = vset.pattern.permute.xlu0 65
    %467 = vperm.xlu0 %466, %v209
    %v468 = vpop.permute.xlu0 %467
    %470 = vset.pattern.permute.xlu0 65
    %471 = vperm.xlu0 %470, %v214
    %v472 = vpop.permute.xlu0 %471
    %474 = vset.pattern.permute.xlu0 65
    %475 = vperm.xlu0 %474, %v217
    %v476 = vpop.permute.xlu0 %475
    %v478 = vlaneseq
    %v479 = vshrl.u32 %v478, 7
    %v480 = vsub.s32 1, %v479
    %v481 = vrot.slane %v259, %v480
    %v482 = vadd.f32 %v464, %v481
    %v483 = vadd.f32 %v468, %v481
    %v484 = vadd.f32 %v472, %v481
    %v485 = vadd.f32 %v476, %v481
    %v486 = vmul.f32 %v482, 0.2
    %v487 = vmul.f32 %v483, 0.2
    %v488 = vmul.f32 %v484, 0.2
    %v489 = vmul.f32 %v485, 0.2
    %v490 = vmax.f32 %v482, %v486
    %v491 = vmax.f32 %v483, %v487
    %v492 = vmax.f32 %v484, %v488
    %v493 = vmax.f32 %v485, %v489
    %v494 = vadd.f32 %v490, %v52
    %v495 = vadd.f32 %v491, %v53
    %v496 = vadd.f32 %v492, %v54
    %v497 = vadd.f32 %v493, %v55
    %v498 = vsel %vm307, %v494, -inf
    %499 = vmax.xlane.f32.xlu0 %v498
    %v500 = vpop.xlane.xlu0 %499
    %v501 = vsel %vm307, %v495, -inf
    %502 = vmax.xlane.f32.xlu0 %v501
    %v503 = vpop.xlane.xlu0 %502
    %v504 = vsel %vm307, %v496, -inf
    %505 = vmax.xlane.f32.xlu0 %v504
    %v506 = vpop.xlane.xlu0 %505
    %v507 = vsel %vm307, %v497, -inf
    %508 = vmax.xlane.f32.xlu0 %v507
    %v509 = vpop.xlane.xlu0 %508
    %v510 = vsub.f32 %v494, %v500
    %v511 = vsub.f32 %v495, %v503
    %v512 = vsub.f32 %v496, %v506
    %v513 = vsub.f32 %v497, %v509
    %v514 = vmul.f32 %v510, 1.442695
    %v515 = vpow.pop %v514
    %v516 = vmul.f32 %v511, 1.442695
    %v517 = vpow.pop %v516
    %v518 = vmul.f32 %v512, 1.442695
    %v519 = vpow.pop %v518
    %v520 = vmul.f32 %v513, 1.442695
    %v521 = vpow.pop %v520
    %v522 = vpack.c.bf16 %v517, %v515
    %v523 = vpack.c.bf16 %v521, %v519
    %526 = vrot.lane.b32.xlu0 %v265, 95
    %v527 = vpop.permute.xlu0 %526
    %528 = vrot.lane.b32.xlu0 %v266, 95
    %v529 = vpop.permute.xlu0 %528
    %v533 = vsel %vm307, %v522, 0
    %v536 = vsel %vm307, %v523, 0
    %538 = vmatprep.subr.bf16.mxu0 0
    %539 = vmatpush1.bf16.msra.mxu0 0
    %540 = vmatprep.subr.bf16.mxu0 0
    %541 = vmatpush1.bf16.msra.mxu0 0
    %542 = vmatprep.subr.bf16.mxu0 0
    %543 = vmatpush1.bf16.msra.mxu0 0
    %544 = vmatprep.subr.bf16.mxu0 0
    %545 = vmatpush1.bf16.msra.mxu0 0
    %546 = vmatprep.subr.bf16.mxu0 0
    %547 = vmatpush1.bf16.msra.mxu0 0
    %548 = vmatprep.subr.bf16.mxu0 0
    %549 = vmatpush1.bf16.msra.mxu0 0
    %550 = vmatprep.subr.bf16.mxu0 0
    %551 = vmatpush1.bf16.msra.mxu0 %v529
    %552 = vmatprep.subr.bf16.mxu0 0
    %553 = vmatpush1.bf16.msra.mxu0 %v527
    %554 = vmatprep.subr.bf16.mxu0 0
    %555 = vmatpush2.bf16.msra.mxu0 0
    %556 = vmatprep.subr.bf16.mxu0 0
    %557 = vmatpush2.bf16.msra.mxu0 0
    %558 = vmatprep.subr.bf16.mxu0 0
    %559 = vmatpush2.bf16.msra.mxu0 0
    %560 = vmatprep.subr.bf16.mxu0 0
    %561 = vmatpush2.bf16.msra.mxu0 0
    %562 = vmatprep.subr.bf16.mxu0 0
    %563 = vmatpush2.bf16.msra.mxu0 0
    %564 = vmatprep.subr.bf16.mxu0 0
    %565 = vmatpush2.bf16.msra.mxu0 0
    %566 = vmatprep.subr.bf16.mxu0 0
    %567 = vmatpush2.bf16.msra.mxu0 0
    %568 = vmatprep.subr.bf16.mxu0 0
    %569 = vmatpush2.bf16.msra.mxu0 0
    %570 = vmatprep.mubr.bf16.mxu0 0
    %571 = vmatmul.mubr.bf16.gmra.mxu0 %v533
    %v572 = vpop.f32.mrf.mxu0
    %v573 = vadd.f32 0.0, %v572
    %v574 = vpop.f32.mrf.mxu0
    %v575 = vpop.f32.mrf.mxu0
    %v576 = vadd.f32 0.0, %v575
    %v577 = vpop.f32.mrf.mxu0
    %578 = vmatprep.mubr.bf16.mxu0 0
    %579 = vmatmul.mubr.bf16.gmra.mxu0 %v536
    %v580 = vpop.f32.mrf.mxu0
    %v581 = vadd.f32 0.0, %v580
    %v582 = vpop.f32.mrf.mxu0
    %v583 = vpop.f32.mrf.mxu0
    %v584 = vadd.f32 0.0, %v583
    %v585 = vpop.f32.mrf.mxu0
    %586 = vdwg.mxu0
    %v587 = vrcp.pop %v573
    %v588 = vrcp.pop %v576
    %v589 = vrcp.pop %v581
    %v590 = vrcp.pop %v584
    %592 = vset.pattern.permute.xlu0 32
    %593 = vperm.xlu0 %592, %v587
    %v594 = vpop.permute.xlu0 %593
    %597 = vset.pattern.permute.xlu0 32
    %598 = vperm.xlu0 %597, %v588
    %v599 = vpop.permute.xlu0 %598
    %602 = vset.pattern.permute.xlu0 32
    %603 = vperm.xlu0 %602, %v589
    %v604 = vpop.permute.xlu0 %603
    %607 = vset.pattern.permute.xlu0 32
    %608 = vperm.xlu0 %607, %v590
    %v609 = vpop.permute.xlu0 %608
    %v611 = vmul.f32 %v573, %v594
    %v612 = vmul.f32 %v576, %v599
    %v613 = vmul.f32 %v581, %v604
    %v614 = vmul.f32 %v584, %v609
    %v615 = vlaneseq
    %v616 = vshrl.u32 %v615, 7
    %v617 = vsub.s32 2, %v616
    %v618 = vrot.slane %v264, %v617
    %v619 = vmul.f32 %v611, %v618
    %v620 = vmul.f32 %v612, %v618
    %v621 = vmul.f32 %v613, %v618
    %v622 = vmul.f32 %v614, %v618
    %v623 = vlaneseq
    %v624 = vshrl.u32 %v623, 7
    %v625 = vsub.s32 3, %v624
    %v626 = vrot.slane %v264, %v625
    %v627 = vadd.f32 %v619, %v626
    %v628 = vadd.f32 %v620, %v626
    %v629 = vadd.f32 %v621, %v626
    %v630 = vadd.f32 %v622, %v626
    %631 = vrot.lane.b32.xlu0 %v206, 96
    %v632 = vpop.permute.xlu0 %631
    %633 = vrot.lane.b32.xlu0 %v209, 96
    %v634 = vpop.permute.xlu0 %633
    %635 = vrot.lane.b32.xlu0 %v214, 96
    %v636 = vpop.permute.xlu0 %635
    %637 = vrot.lane.b32.xlu0 %v217, 96
    %v638 = vpop.permute.xlu0 %637
    %v643 = vadd.f32 %v627, %v632
    %v644 = vadd.f32 %v628, %v634
    %v645 = vadd.f32 %v629, %v636
    %v646 = vadd.f32 %v630, %v638
    %v647 = vmax.f32 %v643, 0.0
    %v648 = vmax.f32 %v644, 0.0
    %v649 = vmax.f32 %v645, 0.0
    %v650 = vmax.f32 %v646, 0.0
    %v651 = vpack.c.bf16 %v648, %v647
    %v652 = vpack.c.bf16 %v650, %v649
    %v655 = vunpack.c.l.b16 %v651
    %v656 = vunpack.c.h.b16 %v651
    %v657 = vunpack.c.l.b16 %v652
    %v658 = vunpack.c.h.b16 %v652
    %v659 = vpack.c.b16 %v655, %v655
    %v660 = vpack.c.b16 %v656, %v656
    %v661 = vpack.c.b16 %v657, %v657
    %v662 = vpack.c.b16 %v658, %v658
    %667 = vst.msk [vmem:[#allocation4] sm:$0xf] %vm457, %v659
    %668 = vst.msk [vmem:[#allocation4 + $0x4] sm:$0xf] %vm457, %v660
    %669 = vst.msk [vmem:[#allocation4 + $0x8] sm:$0xf] %vm457, %v661
    %670 = vst.msk [vmem:[#allocation4 + $0xc] sm:$0xf] %vm457, %v662
    // Predicated region
    $region30: #{tpu_custom_call.1} parent=1 // pred_check
      _
    $region31: #{tpu_custom_call.1} parent=1 // pred_check_branch
      %672 = sbr.rel (0) target = $region33
    $region32: #{tpu_custom_call.1} parent=1 // pred_region
      %s674 = ssub.s32 256, 256
      %675 = vsyncadd [#allocation3], %s674
      %s676 = sshll.u32 [#allocation2], 4
      %s677 = int_to_ptr.vmem [resolvable:$true] %s676
      %682 = dma.vmem_to_hbm [thread:$0]  %s677, 256, %s7, [#allocation3], 64, 64, 4
    $region33: #{tpu_custom_call.1} parent=1 // pred_fallthru
      _
    // Predicated region
    $region34: #{tpu_custom_call.1} parent=1 // pred_check
      _
    $region35: #{tpu_custom_call.1} parent=1 // pred_check_branch
      %684 = sbr.rel (0) target = $region37
    $region36: #{tpu_custom_call.1} parent=1 // pred_region
      %s686 = ssub.s32 256, 256
      %687 = vsyncadd [#allocation5], %s686
      %s688 = sshll.u32 [#allocation4], 4
      %s689 = int_to_ptr.vmem [resolvable:$true] %s688
      %694 = dma.vmem_to_hbm [thread:$0]  %s689, 256, %s8, [#allocation5], 64, 64, 4
    $region37: #{tpu_custom_call.1} parent=1 // pred_fallthru
      _
    // Predicated region
    $region38: #{tpu_custom_call.1} parent=1 // pred_check
      _
    $region39: #{tpu_custom_call.1} parent=1 // pred_check_branch
      %696 = sbr.rel (0) target = $region41
    $region40: #{tpu_custom_call.1} parent=1 // pred_region
      %697 = dma.done [#allocation3], 256
    $region41: #{tpu_custom_call.1} parent=1 // pred_fallthru
      _
    // Predicated region
    $region42: #{tpu_custom_call.1} parent=1 // pred_check
      _
    $region43: #{tpu_custom_call.1} parent=1 // pred_check_branch
      %699 = sbr.rel (0) target = $region45
    $region44: #{tpu_custom_call.1} parent=1 // pred_region
      %700 = dma.done [#allocation5], 256
    $region45: #{tpu_custom_call.1} parent=1 // pred_fallthru
      _
    %701 = vsyncpa [#allocation3], 1
    %702 = vsyncpa [#allocation5], 1

</llo_original>
